<compile_context>
chip_gen: v7x
topology: tpu7x:2x2x1
jax: 0.10.0
libtpu: 0.0.40
codegen_flags: <defaults>
</compile_context>

<pallas_src>
import jax
import jax.numpy as jnp
from jax.experimental import pallas as pl
from jax.experimental.pallas import tpu as pltpu


def _round_up(a, b):
    return (a + b - 1) // b * b


def _nconv_kernel(a_ref, x_ref, o_ref):
    # a_ref: (Vp, Wp)   x_ref: (Vp, Tn)   o_ref: (Wp, Tn)
    # Contract A's V (axis 0) with X's V (axis 0) -> (Wp, Tn); f32 accumulate.
    out = jax.lax.dot_general(
        a_ref[...], x_ref[...],
        dimension_numbers=(((0,), (0,)), ((), ())),
        preferred_element_type=jnp.float32,
    )
    o_ref[...] = out.astype(o_ref.dtype)


def nconv(x, A, *, compute_dtype=None, lane_tile_max=4096,
          vmem_budget_bytes=32 * 1024 * 1024):
    """x: (N, C, V, L), A: (V, W) -> (N, C, W, L); matches torch.einsum('ncvl,vw->ncwl').

    compute_dtype: optionally cast operands (e.g. jnp.bfloat16 on v6e/v7x) for
    the MXU; accumulation stays f32 and the output is cast back to x.dtype.
    """
    N, C, V, L = x.shape
    V2, W = A.shape
    assert V == V2, "A's first dim must match x's node dim V"

    out_dtype = x.dtype
    if compute_dtype is not None:
        x = x.astype(compute_dtype)
        A = A.astype(compute_dtype)

    # ---- Layout: fold batch into the lane (last) dim -> X' (V, N*C*L) ----
    B_total = N * C * L
    x_vb = jnp.transpose(x, (2, 0, 1, 3)).reshape(V, B_total)

    # ---- Pad once in the wrapper (never per grid step) ----
    Vp = _round_up(V, 8)           # sublane alignment of the contraction dim
    Wp = _round_up(W, 8)           # sublane alignment of the output rows

    in_item = jnp.dtype(x_vb.dtype).itemsize
    out_item = jnp.dtype(out_dtype).itemsize

    # Lane-tile width chosen against a VMEM budget: A is resident, x/out tiles
    # are double-buffered by the pipeline.
    a_bytes = Vp * Wp * in_item
    per_lane = 2 * (Vp * in_item + Wp * out_item)     # 2x: double buffering
    tn_cap = max(128, ((vmem_budget_bytes - 2 * a_bytes) // max(per_lane, 1))
                 // 128 * 128)
    Tn = min(lane_tile_max, tn_cap, _round_up(B_total, 128))
    Bp = _round_up(B_total, Tn)

    x_p = jnp.pad(x_vb, ((0, Vp - V), (0, Bp - B_total)))
    a_p = jnp.pad(A, ((0, Vp - V), (0, Wp - W)))       # zero rows of A kill V padding

    grid = (Bp // Tn,)

    cost = pl.CostEstimate(
        flops=2 * V * W * B_total,
        transcendentals=0,
        bytes_accessed=(Vp * Bp + Vp * Wp) * in_item + Wp * Bp * out_item,
    )

    y_p = pl.pallas_call(
        _nconv_kernel,
        out_shape=jax.ShapeDtypeStruct((Wp, Bp), out_dtype),
        grid_spec=pltpu.PrefetchScalarGridSpec(
            num_scalar_prefetch=0,
            grid=grid,
            in_specs=[
                # A: constant block index -> fetched once, stays resident in VMEM.
                pl.BlockSpec((Vp, Wp), lambda j: (0, 0)),
                # X: one wide, lane-dense tile per step.
                pl.BlockSpec((Vp, Tn), lambda j: (0, j)),
            ],
            out_specs=pl.BlockSpec((Wp, Tn), lambda j: (0, j)),
        ),
        compiler_params=pltpu.CompilerParams(
            # Non-reduction axis: megacore-shardable on v7x, harmless elsewhere.
            dimension_semantics=("parallel",),
            # Headroom for double-buffered wide tiles; stays under v7x's 64 MiB.
            vmem_limit_bytes=48 * 1024 * 1024,
        ),
        cost_estimate=cost,
    )(a_p, x_p)

    # ---- Un-pad and restore NCWL layout (.contiguous() equivalent) ----
    y = y_p[:W, :B_total].reshape(W, N, C, L)
    return jnp.transpose(y, (1, 2, 0, 3))


if __name__ == "__main__":
    key = jax.random.PRNGKey(0)
    kx, ka = jax.random.split(key)

    # Small shapes consistent with the einsum: N=2, C=4, V=16, L=16, W=16.
    N, C, V, L, W = 2, 4, 16, 16, 16
    x = jax.random.normal(kx, (N, C, V, L), dtype=jnp.float32)
    A = jax.random.normal(ka, (V, W), dtype=jnp.float32)

    out = nconv(x, A)
    out = jax.block_until_ready(out)

    # Correctness check against the reference einsum (f32 compute path).
    ref = jnp.einsum('ncvl,vw->ncwl', x, A)
    assert out.shape == (N, C, W, L)
    assert jnp.allclose(out, ref, atol=1e-4, rtol=1e-4), "mismatch vs reference einsum"

    print("KERNEL_OK")
</pallas_src>

<mosaic_0001>
module attributes {stable_mosaic.version = 11 : i64} {
  func.func @_nconv_kernel(%arg0: i32, %arg1: memref<16x16xf32, #tpu.memory_space<vmem>>, %arg2: memref<16x128xf32, #tpu.memory_space<vmem>>, %arg3: memref<16x128xf32, #tpu.memory_space<vmem>>) attributes {dimension_semantics = [#tpu.dimension_semantics<parallel>], iteration_bounds = array<i64: 1>, scalar_prefetch = 0 : i64, scratch_operands = 0 : i64, tpu.core_type = #tpu.core_type<tc>, window_params = [{pipeline_mode = #tpu.pipeline_mode<synchronous>, transform_indices = @transform_0, window_bounds = array<i64: 16, 16>}, {transform_indices = @transform_1, window_bounds = array<i64: 16, 128>}, {transform_indices = @transform_2, window_bounds = array<i64: 16, 128>}]} {
    %c0 = arith.constant 0 : index
    %c0_0 = arith.constant 0 : index
    %0 = vector.load %arg1[%c0, %c0_0] : memref<16x16xf32, #tpu.memory_space<vmem>>, vector<16x16xf32>
    %c0_1 = arith.constant 0 : index
    %c0_2 = arith.constant 0 : index
    %1 = vector.load %arg2[%c0_1, %c0_2] : memref<16x128xf32, #tpu.memory_space<vmem>>, vector<16x128xf32>
    %cst = arith.constant dense<0.000000e+00> : vector<16x128xf32>
    %2 = tpu.matmul %0, %1, %cst {dimension_numbers = #tpu.dot_dimension_numbers<[0], [0], [1], [1], [0, 1, 1, 1], [], []>} : vector<16x16xf32>, vector<16x128xf32>, vector<16x128xf32> -> vector<16x128xf32>
    %c0_3 = arith.constant 0 : index
    %c0_4 = arith.constant 0 : index
    %3 = vector.load %arg3[%c0_3, %c0_4] : memref<16x128xf32, #tpu.memory_space<vmem>>, vector<16x128xf32>
    tpu.vector_store %arg3[%c0_3, %c0_4], %2 {strides = array<i32>} : memref<16x128xf32, #tpu.memory_space<vmem>>, vector<16x128xf32>,
    return
  }
  func.func @transform_0(%arg0: i32) -> (i32, i32) {
    %c0_i32 = arith.constant 0 : i32
    %c0_i32_0 = arith.constant 0 : i32
    %c0_i32_1 = arith.constant 0 : i32
    return %c0_i32, %c0_i32_0 : i32, i32
  }
  func.func @transform_1(%arg0: i32) -> (i32, i32) {
    %c0_i32 = arith.constant 0 : i32
    %c0_i32_0 = arith.constant 0 : i32
    return %c0_i32, %arg0 : i32, i32
  }
  func.func @transform_2(%arg0: i32) -> (i32, i32) {
    %c0_i32 = arith.constant 0 : i32
    %c0_i32_0 = arith.constant 0 : i32
    return %c0_i32, %arg0 : i32, i32
  }
}

</mosaic_0001>

<llo_original>
// kernel: tpu_custom_call.1
$region0: #{tpu_custom_call.1}
  #allocation0 [shape = 'u32[]', space=smem, size = 0x4, offset = 0x4, fixed_abs, tag = 'smem constant byte address 0x4 - core index']
  #allocation1 [shape = 'u32[144,128]{1,0:T(1,128)}', space=vmem, size = 0x12000, scoped, tag = 'internal scratch']
  %s0 = inlined_call_operand.hbm [shape: f32[16,16], index: 0, kind: input, shape index: {}]
  %s1 = inlined_call_operand.hbm [shape: f32[16,128], index: 1, kind: input, shape index: {}]
  %s2 = inlined_call_operand.hbm [shape: f32[16,128], index: 2, kind: output, shape index: {}]
  %s3 = sld [smem:[#allocation0]]
  $region26: #{tpu_custom_call.1} parent=0
    _
  %s5 = ssub.s32 1, %s3
  %s6 = scalar_select 0, %s5, %s3
  $region1: #{tpu_custom_call.1} parent=0
    #allocation2 [shape = 'u8[8192]{0}', space=vmem, size = 0x2000, scoped, tag = 'input window, operand 0, single buffered']
    #allocation3 [shape = 's32[1]{0}', space=sflag, size = 0x4, scoped, tag = 'scoped memory for tpu_custom_call.1']
    #allocation4 [shape = 's32[1]{0}', space=sflag, size = 0x4, scoped, tag = 'scoped memory for tpu_custom_call.1']
    #allocation5 [shape = 'u8[8192]{0}', space=vmem, size = 0x2000, scoped, tag = 'input window, operand 1, single buffered']
    #allocation6 [shape = 's32[1]{0}', space=sflag, size = 0x4, scoped, tag = 'scoped memory for tpu_custom_call.1']
    #allocation7 [shape = 'u8[8192]{0}', space=vmem, size = 0x2000, scoped, tag = 'output window, operand 0, single buffered']
    %7 = vsyncpa [#allocation3], 0
    %8 = vsyncpa [#allocation6], 0
    %9 = vsyncpa [#allocation4], 0
    // Predicated region
    $region2: #{tpu_custom_call.1} parent=1 // pred_check
      _
    $region3: #{tpu_custom_call.1} parent=1 // pred_check_branch
      %11 = sbr.rel (0) target = $region5
    $region4: #{tpu_custom_call.1} parent=1 // pred_region
      %s13 = ssub.s32 256, 256
      %14 = vsyncadd [#allocation3], %s13
      %s15 = sshll.u32 [#allocation2], 4
      %s16 = int_to_ptr.vmem [resolvable:$true] %s15
      %21 = dma.hbm_to_vmem [thread:$0]  %s0, 256, %s16, [#allocation3], 128, 128, 8
    $region5: #{tpu_custom_call.1} parent=1 // pred_fallthru
      _
    // Predicated region
    $region6: #{tpu_custom_call.1} parent=1 // pred_check
      _
    $region7: #{tpu_custom_call.1} parent=1 // pred_check_branch
      %23 = sbr.rel (0) target = $region9
    $region8: #{tpu_custom_call.1} parent=1 // pred_region
      %s25 = ssub.s32 256, 256
      %26 = vsyncadd [#allocation6], %s25
      %s27 = sshll.u32 [#allocation5], 4
      %s28 = int_to_ptr.vmem [resolvable:$true] %s27
      %33 = dma.hbm_to_vmem [thread:$0]  %s1, 256, %s28, [#allocation6], 128, 128, 8
    $region9: #{tpu_custom_call.1} parent=1 // pred_fallthru
      _
    // Predicated region
    $region10: #{tpu_custom_call.1} parent=1 // pred_check
      _
    $region11: #{tpu_custom_call.1} parent=1 // pred_check_branch
      %35 = sbr.rel (0) target = $region13
    $region12: #{tpu_custom_call.1} parent=1 // pred_region
      %36 = dma.done [#allocation3], 256
    $region13: #{tpu_custom_call.1} parent=1 // pred_fallthru
      _
    // Predicated region
    $region14: #{tpu_custom_call.1} parent=1 // pred_check
      _
    $region15: #{tpu_custom_call.1} parent=1 // pred_check_branch
      %38 = sbr.rel (0) target = $region17
    $region16: #{tpu_custom_call.1} parent=1 // pred_region
      %39 = dma.done [#allocation6], 256
    $region17: #{tpu_custom_call.1} parent=1 // pred_fallthru
      _
    %v40 = vld [vmem:[#allocation2] sm:$0xff]
    %v41 = vld [vmem:[#allocation2 + $0x8] sm:$0xff]
    %v42 = vld [vmem:[#allocation5] sm:$0xff]
    %v43 = vld [vmem:[#allocation5 + $0x8] sm:$0xff]
    %44 = vxpose.xlu0.b32.start [1/16] %v40, 128
    %45 = vxpose.xlu0.b32.cont [2/16] %v41, 128
    %46 = vxpose.xlu0.b32.cont [3/16] 0.0, 128
    %47 = vxpose.xlu0.b32.cont [4/16] 0.0, 128
    %48 = vxpose.xlu0.b32.cont [5/16] 0.0, 128
    %49 = vxpose.xlu0.b32.cont [6/16] 0.0, 128
    %50 = vxpose.xlu0.b32.cont [7/16] 0.0, 128
    %51 = vxpose.xlu0.b32.cont [8/16] 0.0, 128
    %52 = vxpose.xlu0.b32.cont [9/16] 0.0, 128
    %53 = vxpose.xlu0.b32.cont [10/16] 0.0, 128
    %54 = vxpose.xlu0.b32.cont [11/16] 0.0, 128
    %55 = vxpose.xlu0.b32.cont [12/16] 0.0, 128
    %56 = vxpose.xlu0.b32.cont [13/16] 0.0, 128
    %57 = vxpose.xlu0.b32.cont [14/16] 0.0, 128
    %58 = vxpose.xlu0.b32.cont [15/16] 0.0, 128
    %59 = vxpose.xlu0.b32.end [16/16] 0.0, 128
    %v60 = vpop.trf.xlu0
    %v61 = vpop.trf.xlu0
    %v62 = vpop.trf.xlu0
    %v63 = vpop.trf.xlu0
    %v64 = vpop.trf.xlu0
    %v65 = vpop.trf.xlu0
    %v66 = vpop.trf.xlu0
    %v67 = vpop.trf.xlu0
    %v68 = vpop.trf.xlu0
    %v69 = vpop.trf.xlu0
    %v70 = vpop.trf.xlu0
    %v71 = vpop.trf.xlu0
    %v72 = vpop.trf.xlu0
    %v73 = vpop.trf.xlu0
    %v74 = vpop.trf.xlu0
    %v75 = vpop.trf.xlu0
    %vm76 = vcmask 130048
    %v78 = vsel %vm76, %v60, 0
    %v81 = vsel %vm76, %v61, 0
    %83 = vmatprep.subr.mxu0 0.0
    %84 = vmatpush1.msra.mxu0 %v42
    %85 = vmatprep.subr.mxu0 0.0
    %86 = vmatpush1.msra.mxu0 %v43
    %87 = vmatprep.subr.mxu0 0.0
    %88 = vmatpush1.msra.mxu0 0.0
    %89 = vmatprep.subr.mxu0 0.0
    %90 = vmatpush1.msra.mxu0 0.0
    %91 = vmatprep.subr.mxu0 0.0
    %92 = vmatpush1.msra.mxu0 0.0
    %93 = vmatprep.subr.mxu0 0.0
    %94 = vmatpush1.msra.mxu0 0.0
    %95 = vmatprep.subr.mxu0 0.0
    %96 = vmatpush1.msra.mxu0 0.0
    %97 = vmatprep.subr.mxu0 0.0
    %98 = vmatpush1.msra.mxu0 0.0
    %99 = vmatprep.subr.mxu0 0.0
    %100 = vmatpush1.msra.mxu0 0.0
    %101 = vmatprep.subr.mxu0 0.0
    %102 = vmatpush1.msra.mxu0 0.0
    %103 = vmatprep.subr.mxu0 0.0
    %104 = vmatpush1.msra.mxu0 0.0
    %105 = vmatprep.subr.mxu0 0.0
    %106 = vmatpush1.msra.mxu0 0.0
    %107 = vmatprep.subr.mxu0 0.0
    %108 = vmatpush1.msra.mxu0 0.0
    %109 = vmatprep.subr.mxu0 0.0
    %110 = vmatpush1.msra.mxu0 0.0
    %111 = vmatprep.subr.mxu0 0.0
    %112 = vmatpush1.msra.mxu0 0.0
    %113 = vmatprep.subr.mxu0 0.0
    %114 = vmatpush1.msra.mxu0 0.0
    %115 = vmatprep.subr.mxu0 0.0
    %116 = vmatpush1.msra.mxu0 0.0
    %117 = vmatprep.subr.mxu0 0.0
    %118 = vmatpush1.msra.mxu0 0.0
    %119 = vmatprep.subr.mxu0 0.0
    %120 = vmatpush1.msra.mxu0 0.0
    %121 = vmatprep.subr.mxu0 0.0
    %122 = vmatpush1.msra.mxu0 0.0
    %123 = vmatprep.subr.mxu0 0.0
    %124 = vmatpush1.msra.mxu0 0.0
    %125 = vmatprep.subr.mxu0 0.0
    %126 = vmatpush1.msra.mxu0 0.0
    %127 = vmatprep.subr.mxu0 0.0
    %128 = vmatpush1.msra.mxu0 0.0
    %129 = vmatprep.subr.mxu0 0.0
    %130 = vmatpush1.msra.mxu0 0.0
    %131 = vmatprep.subr.mxu0 0.0
    %132 = vmatpush1.msra.mxu0 0.0
    %133 = vmatprep.subr.mxu0 0.0
    %134 = vmatpush1.msra.mxu0 0.0
    %135 = vmatprep.subr.mxu0 0.0
    %136 = vmatpush1.msra.mxu0 0.0
    %137 = vmatprep.subr.mxu0 0.0
    %138 = vmatpush1.msra.mxu0 0.0
    %139 = vmatprep.subr.mxu0 0.0
    %140 = vmatpush1.msra.mxu0 0.0
    %141 = vmatprep.subr.mxu0 0.0
    %142 = vmatpush1.msra.mxu0 0.0
    %143 = vmatprep.subr.mxu0 0.0
    %144 = vmatpush1.msra.mxu0 0.0
    %145 = vmatprep.subr.mxu0 0.0
    %146 = vmatpush1.msra.mxu0 0.0
    %147 = vmatprep.mubr.f32.mxu0 0.0
    %148 = vmatmul.mubr.f32.gmra.mrb[0].mxu0 %v78
    %v149 = vpop.f32.mrb[0].mxu0
    %v150 = vadd.f32 0.0, %v149
    %v151 = vpop.f32.mrb[0].mxu0
    %152 = vmatprep.mubr.f32.mxu0 0.0
    %153 = vmatmul.mubr.f32.gmra.mrb[0].mxu0 %v81
    %v154 = vpop.f32.mrb[0].mxu0
    %v155 = vadd.f32 0.0, %v154
    %v156 = vpop.f32.mrb[0].mxu0
    %157 = vdwg.mxu0
    %158 = vst [vmem:[#allocation7] sm:$0xff] %v150
    %159 = vst [vmem:[#allocation7 + $0x8] sm:$0xff] %v155
    // Predicated region
    $region18: #{tpu_custom_call.1} parent=1 // pred_check
      _
    $region19: #{tpu_custom_call.1} parent=1 // pred_check_branch
      %161 = sbr.rel (0) target = $region21
    $region20: #{tpu_custom_call.1} parent=1 // pred_region
      %s163 = ssub.s32 256, 256
      %164 = vsyncadd [#allocation4], %s163
      %s165 = sshll.u32 [#allocation7], 4
      %s166 = int_to_ptr.vmem [resolvable:$true] %s165
      %171 = dma.vmem_to_hbm [thread:$0]  %s166, 256, %s2, [#allocation4], 128, 128, 8
    $region21: #{tpu_custom_call.1} parent=1 // pred_fallthru
      _
    // Predicated region
    $region22: #{tpu_custom_call.1} parent=1 // pred_check
      _
    $region23: #{tpu_custom_call.1} parent=1 // pred_check_branch
      %173 = sbr.rel (0) target = $region25
    $region24: #{tpu_custom_call.1} parent=1 // pred_region
      %174 = dma.done [#allocation4], 256
    $region25: #{tpu_custom_call.1} parent=1 // pred_fallthru
      _
    %175 = vsyncpa [#allocation3], 1
    %176 = vsyncpa [#allocation6], 1
    %177 = vsyncpa [#allocation4], 1

</llo_original>
